<compile_context>
chip_gen: v6e
topology: v6e:2x2x1
jax: 0.10.0
libtpu: 0.0.40
codegen_flags: <defaults>
</compile_context>

<pallas_src>
import jax
import jax.numpy as jnp
from jax.experimental import pallas as pl
from jax.experimental.pallas import tpu as pltpu


def _round_up(x: int, m: int) -> int:
    return (x + m - 1) // m * m


def _pick_tile(extent: int, cap: int) -> int:
    """extent is a multiple of 128; return the largest tile <= cap that divides extent."""
    if extent <= cap:
        return extent
    for cand in (512, 384, 256, 128):
        if cand <= cap and extent % cand == 0:
            return cand
    return 128


def _make_averager_kernel(weighted: bool):
    def kernel(nu_ref, inv_ref, invden_ref, emb_ref, *rest):
        # nu_ref    : SMEM (1,) int32   -- num_unique (scalar prefetch)
        # inv_ref   : VMEM (1, tn) i32  -- inverse-index tile (padded samples carry -1)
        # invden_ref: VMEM (tm, 1) f32  -- 1 / clamped denominator (precomputed)
        # emb_ref   : VMEM (tn, td)     -- embedding tile (native dtype)
        # [w_ref    : VMEM (1, tn) f32] -- per-sample weights (weighted only)
        # out_ref   : VMEM (tm, td)     -- per-identity aggregate tile
        # acc_ref   : VMEM (tm, td) f32 -- scratch segment-sum accumulator
        if weighted:
            w_ref, out_ref, acc_ref = rest
        else:
            out_ref, acc_ref = rest

        k = pl.program_id(2)
        nk = pl.num_programs(2)
        tm = acc_ref.shape[0]
        m_start = pl.program_id(0) * tm

        @pl.when(k == 0)
        def _init():
            acc_ref[...] = jnp.zeros_like(acc_ref)

        # Skip M-tiles that lie entirely past the live unique slots (their emb DMA is also
        # elided by the clamped index_map in the wrapper).
        @pl.when(m_start < nu_ref[0])
        def _accumulate():
            # (tm,1) slot iota vs (1,tn) inv row: broadcasted compare, no (tm,tn) int32 iota.
            slot = jax.lax.broadcasted_iota(jnp.int32, (tm, 1), 0) + m_start
            match = slot == inv_ref[...]                              # (tm, tn) bool
            if weighted:
                # Weights folded into the onehot; cast to emb's dtype so bf16 inputs use the
                # bf16 MXU path (accumulation stays f32).
                onehot = jnp.where(match, w_ref[...], 0.0).astype(emb_ref.dtype)
            else:
                onehot = match.astype(emb_ref.dtype)                  # exact 0/1 in bf16/f32
            acc_ref[...] += jnp.dot(onehot, emb_ref[...],
                                    preferred_element_type=jnp.float32)

        @pl.when(k == nk - 1)
        def _finalize():
            # Multiply by the precomputed reciprocal denominator (dead rows: acc == 0).
            out_ref[...] = (acc_ref[...] * invden_ref[...]).astype(out_ref.dtype)

    return kernel


def embedding_averager(emb, labels, weights=None, *, reduction="mean",
                       return_index_map=False, max_unique=None):
    """JAX/Pallas equivalent of EmbeddingAverager.forward.

    Returns (agg, uniq_ids, inv_or_None). agg has shape [N, D] (or [max_unique, D] if given);
    the first num_unique rows match the PyTorch output, remaining rows are zero (static-shape
    padding). uniq_ids is padded with -1 past the true number of unique labels. If max_unique
    is provided it must be a true upper bound on the number of distinct labels.
    """
    assert reduction in ("mean", "weighted")
    weighted = reduction == "weighted"
    if weighted:
        assert weights is not None, "`weights` required for weighted reduction"

    N, D = emb.shape
    out_rows = int(max_unique) if max_unique is not None else N

    # ---- Glue: unique labels + inverse map (static-size padding) ----
    uniq_ids, inv = jnp.unique(labels, return_inverse=True, size=out_rows, fill_value=-1)
    inv = inv.ravel().astype(jnp.int32)
    num_unique = (jnp.max(inv) + 1).astype(jnp.int32).reshape((1,))

    # ---- Tiling: pad axes to multiples of 128 only; tiles are divisors of padded extents ----
    Np = _round_up(N, 128)          # sample / contraction axis
    Dp = _round_up(D, 128)          # embedding (lane) axis
    Mp0 = _round_up(out_rows, 128)  # unique-slot (output row) axis

    tn = _pick_tile(Np, 1024)
    td = _pick_tile(Dp, 512)
    tm = min(1024, Mp0)             # large tm: main arithmetic-intensity lever
    Mp = _round_up(Mp0, tm)         # padding M is nearly free (dead tiles skip compute + DMA)

    # v7x megacore: make sure at least one 'parallel' grid axis has >= 2 tiles when possible.
    if Mp // tm == 1 and Dp // td == 1:
        if tm % 256 == 0:
            tm //= 2
        elif td % 256 == 0:
            td //= 2

    # ---- Operand preparation (no emb copy when already 128-aligned) ----
    emb_p = emb if (Np, Dp) == (N, D) else jnp.pad(emb, ((0, Np - N), (0, Dp - D)))

    inv_p = inv if Np == N else jnp.pad(inv, (0, Np - N), constant_values=-1)
    inv_p = inv_p.reshape(1, Np)

    # O(N) denominators precomputed here so the kernel's hot K loop has no row-sums / casts.
    if weighted:
        w32 = weights.astype(jnp.float32)
        den = jnp.zeros((Mp,), jnp.float32).at[inv].add(w32)
        invden = 1.0 / jnp.maximum(den, 1e-8)
        w_p = w32 if Np == N else jnp.pad(w32, (0, Np - N))
        w_p = w_p.reshape(1, Np)
    else:
        den = jnp.zeros((Mp,), jnp.float32).at[inv].add(1.0)
        invden = 1.0 / jnp.maximum(den, 1.0)
    invden_p = invden.reshape(Mp, 1)

    # ---- Specs ----
    def _emb_map(m, d, k, nu_ref):
        # Dead M-tiles (entirely >= num_unique) map to a constant block so the pipeline
        # elides their emb DMA entirely (the skip saves memory time, not just compute).
        live = (m * tm < nu_ref[0]).astype(jnp.int32)
        return (k * live, d * live)

    in_specs = [
        pl.BlockSpec((1, tn), lambda m, d, k, nu: (0, k)),    # inv row tile
        pl.BlockSpec((tm, 1), lambda m, d, k, nu: (m, 0)),    # reciprocal denominator
        pl.BlockSpec((tn, td), _emb_map),                     # emb tile
    ]
    operands = [num_unique, inv_p, invden_p, emb_p]
    if weighted:
        in_specs.append(pl.BlockSpec((1, tn), lambda m, d, k, nu: (0, k)))
        operands.append(w_p)

    grid = (Mp // tm, Dp // td, Np // tn)   # reduction axis (samples) last

    # VMEM budget: acc scratch + double-buffered emb/out tiles + small row inputs.
    esize = emb.dtype.itemsize
    working = (tm * td * 4 + 2 * tn * td * esize + 2 * tm * td * esize
               + 4 * tn * 4 + 2 * tm * 4)
    vmem_limit = int(min(max(32 << 20, working * 3 // 2 + (4 << 20)), 48 << 20))

    agg_p = pl.pallas_call(
        _make_averager_kernel(weighted),
        out_shape=jax.ShapeDtypeStruct((Mp, Dp), emb.dtype),
        grid_spec=pltpu.PrefetchScalarGridSpec(
            num_scalar_prefetch=1,          # num_unique -> SMEM (dead-tile skip + DMA elision)
            grid=grid,
            in_specs=in_specs,
            out_specs=pl.BlockSpec((tm, td), lambda m, d, k, nu: (m, d)),
            scratch_shapes=[pltpu.VMEM((tm, td), jnp.float32)],   # f32 segment-sum accumulator
        ),
        compiler_params=pltpu.CompilerParams(
            dimension_semantics=("parallel", "parallel", "arbitrary"),
            vmem_limit_bytes=vmem_limit,
        ),
    )(*operands)

    agg = agg_p[:out_rows, :D]
    if return_index_map:
        return agg, uniq_ids, inv
    return agg, uniq_ids, None


def _reference(emb, labels, weights=None, reduction="mean", out_rows=None):
    """Pure-JAX reference (mirrors the PyTorch semantics, padded to out_rows rows)."""
    N, D = emb.shape
    out_rows = N if out_rows is None else out_rows
    uniq_ids, inv = jnp.unique(labels, return_inverse=True, size=out_rows, fill_value=-1)
    inv = inv.ravel()
    if reduction == "mean":
        summed = jax.ops.segment_sum(emb.astype(jnp.float32), inv, num_segments=out_rows)
        counts = jax.ops.segment_sum(jnp.ones((N,), jnp.float32), inv, num_segments=out_rows)
        return summed / jnp.maximum(counts, 1.0)[:, None]
    w = weights.astype(jnp.float32)
    w_emb = jax.ops.segment_sum(emb.astype(jnp.float32) * w[:, None], inv, num_segments=out_rows)
    w_sum = jax.ops.segment_sum(w, inv, num_segments=out_rows)
    return w_emb / jnp.maximum(w_sum, 1e-8)[:, None]


if __name__ == "__main__":
    key = jax.random.PRNGKey(0)
    k_emb, k_lab, k_w, k_emb2, k_lab2, k_w2 = jax.random.split(key, 6)

    # ---- Small demo shapes (seq=8 samples, hidden=32 embedding dim) ----
    N, D = 8, 32
    emb = jax.random.normal(k_emb, (N, D), dtype=jnp.float32)
    labels = jax.random.randint(k_lab, (N,), 0, 3, dtype=jnp.int32)   # 3 identities
    weights = jax.random.uniform(k_w, (N,), dtype=jnp.float32) + 0.1

    agg_mean, uniq_ids, inv = embedding_averager(
        emb, labels, reduction="mean", return_index_map=True)
    agg_mean = jax.block_until_ready(agg_mean)
    ref_mean = _reference(emb, labels, reduction="mean")
    assert jnp.allclose(agg_mean, ref_mean, atol=1e-5), "mean reduction mismatch"

    agg_w, _, _ = embedding_averager(emb, labels, weights, reduction="weighted")
    agg_w = jax.block_until_ready(agg_w)
    ref_w = _reference(emb, labels, weights, reduction="weighted")
    assert jnp.allclose(agg_w, ref_w, atol=1e-5), "weighted reduction mismatch"

    # ---- Multi-tile path: multiple K tiles, dead M-tile skip + DMA elision, max_unique ----
    N2, D2 = 1536, 256
    emb2 = jax.random.normal(k_emb2, (N2, D2), dtype=jnp.float32)
    labels2 = jax.random.randint(k_lab2, (N2,), 0, 16, dtype=jnp.int32)   # 16 identities
    weights2 = jax.random.uniform(k_w2, (N2,), dtype=jnp.float32) + 0.1

    # Static unique-count bound keeps the M axis small (feedback: avoid M ~ N when few ids).
    agg2_mean, _, _ = embedding_averager(emb2, labels2, reduction="mean", max_unique=256)
    agg2_mean = jax.block_until_ready(agg2_mean)
    ref2_mean = _reference(emb2, labels2, reduction="mean", out_rows=256)
    assert jnp.allclose(agg2_mean, ref2_mean, atol=1e-4), "tiled mean reduction mismatch"

    # No bound: exercises tm=1024 tiles + fully-dead M tiles beyond num_unique.
    agg2_w, _, _ = embedding_averager(emb2, labels2, weights2, reduction="weighted")
    agg2_w = jax.block_until_ready(agg2_w)
    ref2_w = _reference(emb2, labels2, weights2, reduction="weighted")
    assert jnp.allclose(agg2_w, ref2_w, atol=1e-4), "tiled weighted reduction mismatch"

    print("KERNEL_OK")
</pallas_src>

<mosaic_0001>
module attributes {stable_mosaic.version = 11 : i64} {
  func.func @kernel(%arg0: i32, %arg1: i32, %arg2: i32, %arg3: memref<1xi32, #tpu.memory_space<smem>>, %arg4: memref<1x128xi32, #tpu.memory_space<vmem>>, %arg5: memref<128x1xf32, #tpu.memory_space<vmem>>, %arg6: memref<128x128xf32, #tpu.memory_space<vmem>>, %arg7: memref<128x128xf32, #tpu.memory_space<vmem>>, %arg8: memref<128x128xf32, #tpu.memory_space<vmem>>) attributes {dimension_semantics = [#tpu.dimension_semantics<parallel>, #tpu.dimension_semantics<parallel>, #tpu.dimension_semantics<arbitrary>], iteration_bounds = array<i64: 1, 1, 1>, scalar_prefetch = 1 : i64, scratch_operands = 1 : i64, tpu.core_type = #tpu.core_type<tc>, window_params = [{transform_indices = @transform_0, window_bounds = array<i64: 1, 128>}, {transform_indices = @transform_1, window_bounds = array<i64: 128, 1>}, {transform_indices = @transform_2, window_bounds = array<i64: 128, 128>}, {transform_indices = @transform_3, window_bounds = array<i64: 128, 128>}]} {
    %c128_i32 = arith.constant 128 : i32
    %0 = arith.muli %arg0, %c128_i32 : i32
    %c0_i32 = arith.constant 0 : i32
    %1 = arith.cmpi eq, %arg2, %c0_i32 : i32
    %2 = arith.extui %1 : i1 to i32
    %c0_i32_0 = arith.constant 0 : i32
    %3 = arith.cmpi ne, %2, %c0_i32_0 : i32
    scf.if %3 {
      %cst = arith.constant 0.000000e+00 : f32
      %11 = vector.broadcast %cst : f32 to vector<128x128xf32>
      %c0_4 = arith.constant 0 : index
      %c0_5 = arith.constant 0 : index
      %12 = vector.load %arg8[%c0_4, %c0_5] : memref<128x128xf32, #tpu.memory_space<vmem>>, vector<128x128xf32>
      tpu.vector_store %arg8[%c0_4, %c0_5], %11 {strides = array<i32>} : memref<128x128xf32, #tpu.memory_space<vmem>>, vector<128x128xf32>,
    } else {
    }
    %c0 = arith.constant 0 : index
    %4 = memref.load %arg3[%c0] : memref<1xi32, #tpu.memory_space<smem>>
    %5 = arith.cmpi slt, %0, %4 : i32
    %6 = arith.extui %5 : i1 to i32
    %c0_i32_1 = arith.constant 0 : i32
    %7 = arith.cmpi ne, %6, %c0_i32_1 : i32
    scf.if %7 {
      %11 = tpu.iota {dimensions = array<i32: 0>} : vector<128x1xi32>
      %12 = vector.broadcast %0 : i32 to vector<128x1xi32>
      %13 = arith.addi %11, %12 : vector<128x1xi32>
      %c0_4 = arith.constant 0 : index
      %c0_5 = arith.constant 0 : index
      %14 = vector.load %arg4[%c0_4, %c0_5] : memref<1x128xi32, #tpu.memory_space<vmem>>, vector<1x128xi32>
      %15 = vector.broadcast %13 : vector<128x1xi32> to vector<128x128xi32>
      %16 = vector.broadcast %14 : vector<1x128xi32> to vector<128x128xi32>
      %17 = arith.cmpi eq, %15, %16 : vector<128x128xi32>
      %18 = arith.extui %17 : vector<128x128xi1> to vector<128x128xi32>
      %19 = arith.sitofp %18 : vector<128x128xi32> to vector<128x128xf32>
      %c0_6 = arith.constant 0 : index
      %c0_7 = arith.constant 0 : index
      %20 = vector.load %arg8[%c0_6, %c0_7] : memref<128x128xf32, #tpu.memory_space<vmem>>, vector<128x128xf32>
      %c0_8 = arith.constant 0 : index
      %c0_9 = arith.constant 0 : index
      %21 = vector.load %arg6[%c0_8, %c0_9] : memref<128x128xf32, #tpu.memory_space<vmem>>, vector<128x128xf32>
      %cst = arith.constant dense<0.000000e+00> : vector<128x128xf32>
      %22 = tpu.matmul %19, %21, %cst {dimension_numbers = #tpu.dot_dimension_numbers<[1], [0], [0], [1], [0, 0, 1, 1], [], []>} : vector<128x128xf32>, vector<128x128xf32>, vector<128x128xf32> -> vector<128x128xf32>
      %23 = arith.addf %20, %22 : vector<128x128xf32>
      %c0_10 = arith.constant 0 : index
      %c0_11 = arith.constant 0 : index
      %24 = vector.load %arg8[%c0_10, %c0_11] : memref<128x128xf32, #tpu.memory_space<vmem>>, vector<128x128xf32>
      tpu.vector_store %arg8[%c0_10, %c0_11], %23 {strides = array<i32>} : memref<128x128xf32, #tpu.memory_space<vmem>>, vector<128x128xf32>,
    } else {
    }
    %c0_i32_2 = arith.constant 0 : i32
    %8 = arith.cmpi eq, %arg2, %c0_i32_2 : i32
    %9 = arith.extui %8 : i1 to i32
    %c0_i32_3 = arith.constant 0 : i32
    %10 = arith.cmpi ne, %9, %c0_i32_3 : i32
    scf.if %10 {
      %c0_4 = arith.constant 0 : index
      %c0_5 = arith.constant 0 : index
      %11 = vector.load %arg8[%c0_4, %c0_5] : memref<128x128xf32, #tpu.memory_space<vmem>>, vector<128x128xf32>
      %c0_6 = arith.constant 0 : index
      %c0_7 = arith.constant 0 : index
      %12 = vector.load %arg5[%c0_6, %c0_7] : memref<128x1xf32, #tpu.memory_space<vmem>>, vector<128x1xf32>
      %13 = vector.broadcast %12 : vector<128x1xf32> to vector<128x128xf32>
      %14 = arith.mulf %11, %13 : vector<128x128xf32>
      %c0_8 = arith.constant 0 : index
      %c0_9 = arith.constant 0 : index
      %15 = vector.load %arg7[%c0_8, %c0_9] : memref<128x128xf32, #tpu.memory_space<vmem>>, vector<128x128xf32>
      tpu.vector_store %arg7[%c0_8, %c0_9], %14 {strides = array<i32>} : memref<128x128xf32, #tpu.memory_space<vmem>>, vector<128x128xf32>,
    } else {
    }
    return
  }
  func.func @transform_0(%arg0: i32, %arg1: i32, %arg2: i32, %arg3: memref<1xi32, #tpu.memory_space<smem>>) -> (i32, i32) {
    %c0_i32 = arith.constant 0 : i32
    %c0_i32_0 = arith.constant 0 : i32
    return %c0_i32, %arg2 : i32, i32
  }
  func.func @transform_1(%arg0: i32, %arg1: i32, %arg2: i32, %arg3: memref<1xi32, #tpu.memory_space<smem>>) -> (i32, i32) {
    %c0_i32 = arith.constant 0 : i32
    %c0_i32_0 = arith.constant 0 : i32
    return %arg0, %c0_i32 : i32, i32
  }
  func.func @transform_2(%arg0: i32, %arg1: i32, %arg2: i32, %arg3: memref<1xi32, #tpu.memory_space<smem>>) -> (i32, i32) {
    %c128_i32 = arith.constant 128 : i32
    %0 = arith.muli %arg0, %c128_i32 : i32
    %c0 = arith.constant 0 : index
    %1 = memref.load %arg3[%c0] : memref<1xi32, #tpu.memory_space<smem>>
    %2 = arith.cmpi slt, %0, %1 : i32
    %3 = arith.extui %2 : i1 to i32
    %4 = arith.muli %arg2, %3 : i32
    %5 = arith.muli %arg1, %3 : i32
    %c0_i32 = arith.constant 0 : i32
    return %4, %5 : i32, i32
  }
  func.func @transform_3(%arg0: i32, %arg1: i32, %arg2: i32, %arg3: memref<1xi32, #tpu.memory_space<smem>>) -> (i32, i32) {
    %c0_i32 = arith.constant 0 : i32
    return %arg0, %arg1 : i32, i32
  }
}

</mosaic_0001>

<llo_original>
// kernel: tpu_custom_call.1
$region0: #{tpu_custom_call.1}
  #allocation0 [shape = 'u32[]', space=smem, size = 0x4, offset = 0x4, fixed_abs, tag = 'smem constant byte address 0x4 - core index']
  #allocation1 [shape = 'u32[144,128]{1,0:T(1,128)}', space=vmem, size = 0x12000, scoped, tag = 'internal scratch']
  #allocation2 [shape = 'f32[128,128]{1,0:T(8,128)}', space=vmem, size = 0x10000, scoped, tag = 'scratch operand']
  #allocation3 [shape = 's32[1]{0}', space=sflag, size = 0x4, scoped, tag = 'scoped memory for tpu_custom_call.1']
  #allocation4 [shape = 's32[1]{0:T(128)S(6)}', space=smem, size = 0x200, scoped, tag = 'prefetched SMEM operand 0']
  %s0 = inlined_call_operand.<no memory space> [shape: s32[1], index: 0, kind: input, shape index: {}]
  %s1 = inlined_call_operand.vmem [shape: s32[1,128], index: 1, kind: input, shape index: {}]
  %s2 = inlined_call_operand.vmem [shape: f32[128,1], index: 2, kind: input, shape index: {}]
  %s3 = inlined_call_operand.vmem [shape: f32[128,128], index: 3, kind: input, shape index: {}]
  %s4 = inlined_call_operand.hbm [shape: f32[128,128], index: 4, kind: output, shape index: {}]
  %s5 = sld [smem:[#allocation0]]
  $region34: #{tpu_custom_call.1} parent=0
    _
  %s7 = ssub.s32 1, %s5
  %s8 = scalar_select 0, %s7, %s5
  %9 = sst [smem:[#allocation4]] %s0
  $region1: #{tpu_custom_call.1} parent=0
    #allocation5 [shape = 'u8[65536]{0}', space=vmem, size = 0x10000, scoped, tag = 'output window, operand 0, single buffered']
    #allocation6 [shape = 's32[1]{0}', space=sflag, size = 0x4, scoped, tag = 'scoped memory for tpu_custom_call.1']
    %10 = vsyncpa [#allocation6], 0
    // Predicated region
    $region2: #{tpu_custom_call.1} parent=1 // pred_check
      _
    $region3: #{tpu_custom_call.1} parent=1 // pred_check_branch
      %12 = sbr.rel (0) target = $region5
    $region4: #{tpu_custom_call.1} parent=1 // pred_region
      _
    $region5: #{tpu_custom_call.1} parent=1 // pred_fallthru
      _
    // Predicated region
    $region6: #{tpu_custom_call.1} parent=1 // pred_check
      _
    $region7: #{tpu_custom_call.1} parent=1 // pred_check_branch
      %14 = sbr.rel (0) target = $region9
    $region8: #{tpu_custom_call.1} parent=1 // pred_region
      _
    $region9: #{tpu_custom_call.1} parent=1 // pred_fallthru
      _
    // Predicated region
    $region10: #{tpu_custom_call.1} parent=1 // pred_check
      _
    $region11: #{tpu_custom_call.1} parent=1 // pred_check_branch
      %16 = sbr.rel (0) target = $region13
    $region12: #{tpu_custom_call.1} parent=1 // pred_region
      %s17 = smul.u32 0, 128
      %s18 = sld [smem:[#allocation4]]
      %p19 = scmp.lt.s32.totalorder %s17, %s18
      %s20 = scalar_select %p19, 1, 0
      %s21 = smul.u32 0, %s20
      %s22 = smul.u32 0, %s20
      %s23 = smul.u32 16, %s21
      %p24 = scmp.lt.s32.totalorder %s23, 15
      %s25 = scalar_select %p24, %s23, 15
      %p26 = scmp.lt.s32.totalorder %s22, 0
      %s27 = scalar_select %p26, %s22, 0
      %s28 = sadd.s32 %s27, %s25
      %s29 = smul.addr %s28, 8
      %s30 = scalar_lea.vmem %s3, %s29
      %s31 = smul.u32 0, 128
      %s32 = sld [smem:[#allocation4]]
      %p33 = scmp.lt.s32.totalorder %s31, %s32
      %s34 = scalar_select %p33, 1, 0
      %s35 = smul.u32 0, %s34
      %s36 = smul.u32 0, %s34
      %s37 = smul.u32 16, %s35
    $region13: #{tpu_custom_call.1} parent=1 // pred_fallthru
      _
    %s38 = smul.u32 0, 128
    %s39 = sld [smem:[#allocation4]]
    %p40 = scmp.lt.s32.totalorder %s38, %s39
    %s41 = scalar_select %p40, 1, 0
    %s42 = smul.u32 0, %s41
    %s43 = smul.u32 0, %s41
    %s44 = smul.u32 16, %s42
    %p45 = scmp.lt.s32.totalorder %s44, 15
    %s46 = scalar_select %p45, %s44, 15
    %p47 = scmp.lt.s32.totalorder %s43, 0
    %s48 = scalar_select %p47, %s43, 0
    %s49 = sadd.s32 %s48, %s46
    %s50 = smul.addr %s49, 8
    %s51 = scalar_lea.vmem %s3, %s50
    %s52 = smul.u32 0, 128
    %s53 = sld [smem:[#allocation4]]
    %p54 = scmp.lt.s32.totalorder %s52, %s53
    %s55 = scalar_select %p54, 1, 0
    %s56 = smul.u32 0, %s55
    %s57 = smul.u32 0, %s55
    %s58 = smul.u32 16, %s56
    %p59 = scmp.lt.s32.totalorder %s58, 15
    %s60 = scalar_select %p59, %s58, 15
    %p61 = scmp.lt.s32.totalorder %s57, 0
    %s62 = scalar_select %p61, %s57, 0
    %s63 = sadd.s32 %s62, %s60
    %s64 = smul.addr %s63, 8
    %s65 = scalar_lea.vmem %s3, %s64
    %s66 = smul.u32 0, 128
    %s67 = sld [smem:[#allocation4]]
    %p68 = scmp.lt.s32.totalorder %s66, %s67
    %s69 = scalar_select %p68, 1, 0
    %s70 = smul.u32 0, %s69
    %s71 = smul.u32 0, %s69
    %s72 = smul.u32 16, %s70
    %s73 = smul.u32 0, 128
    %p74 = scmp.eq.s32.totalorder 0, 0
    // Predicated region
    $region14: #{tpu_custom_call.1} parent=1 // pred_check
      %p75 = pneg %p74
    $region15: #{tpu_custom_call.1} parent=1 // pred_check_branch
      %77 = sbr.rel (%p75) target = $region17
    $region16: #{tpu_custom_call.1} parent=1 // pred_region
      %78 = vst [vmem:[#allocation2] sm:$0xff] 0.0
      %79 = vst [vmem:[#allocation2 + $0x8] sm:$0xff] 0.0
      %80 = vst [vmem:[#allocation2 + $0x10] sm:$0xff] 0.0
      %81 = vst [vmem:[#allocation2 + $0x18] sm:$0xff] 0.0
      %82 = vst [vmem:[#allocation2 + $0x20] sm:$0xff] 0.0
      %83 = vst [vmem:[#allocation2 + $0x28] sm:$0xff] 0.0
      %84 = vst [vmem:[#allocation2 + $0x30] sm:$0xff] 0.0
      %85 = vst [vmem:[#allocation2 + $0x38] sm:$0xff] 0.0
      %86 = vst [vmem:[#allocation2 + $0x40] sm:$0xff] 0.0
      %87 = vst [vmem:[#allocation2 + $0x48] sm:$0xff] 0.0
      %88 = vst [vmem:[#allocation2 + $0x50] sm:$0xff] 0.0
      %89 = vst [vmem:[#allocation2 + $0x58] sm:$0xff] 0.0
      %90 = vst [vmem:[#allocation2 + $0x60] sm:$0xff] 0.0
      %91 = vst [vmem:[#allocation2 + $0x68] sm:$0xff] 0.0
      %92 = vst [vmem:[#allocation2 + $0x70] sm:$0xff] 0.0
      %93 = vst [vmem:[#allocation2 + $0x78] sm:$0xff] 0.0
    $region17: #{tpu_custom_call.1} parent=1 // pred_fallthru
      _
    %s94 = sld [smem:[#allocation4]]
    %p95 = scmp.lt.s32.totalorder %s73, %s94
    // Predicated region
    $region18: #{tpu_custom_call.1} parent=1 // pred_check
      %p96 = pneg %p95
    $region19: #{tpu_custom_call.1} parent=1 // pred_check_branch
      %98 = sbr.rel (%p96) target = $region21
    $region20: #{tpu_custom_call.1} parent=1 // pred_region
      %v99 = vlaneseq
      %v100 = vshrl.u32 %v99, 7
      %v101 = vadd.s32 %v100, 8
      %v102 = vadd.s32 %v100, 16
      %v103 = vadd.s32 %v100, 24
      %v104 = vadd.s32 %v100, 32
      %v105 = vadd.s32 %v100, 40
      %v106 = vadd.s32 %v100, 48
      %v107 = vadd.s32 %v100, 56
      %v108 = vadd.s32 %v100, 64
      %v109 = vadd.s32 %v100, 72
      %v110 = vadd.s32 %v100, 80
      %v111 = vadd.s32 %v100, 88
      %v112 = vadd.s32 %v100, 96
      %v113 = vadd.s32 %v100, 104
      %v114 = vadd.s32 %v100, 112
      %v115 = vadd.s32 %v100, 120
      %v116 = vstv %s73
      %v117 = vadd.s32 %v100, %v116
      %v118 = vadd.s32 %v101, %v116
      %v119 = vadd.s32 %v102, %v116
      %v120 = vadd.s32 %v103, %v116
      %v121 = vadd.s32 %v104, %v116
      %v122 = vadd.s32 %v105, %v116
      %v123 = vadd.s32 %v106, %v116
      %v124 = vadd.s32 %v107, %v116
      %v125 = vadd.s32 %v108, %v116
      %v126 = vadd.s32 %v109, %v116
      %v127 = vadd.s32 %v110, %v116
      %v128 = vadd.s32 %v111, %v116
      %v129 = vadd.s32 %v112, %v116
      %v130 = vadd.s32 %v113, %v116
      %v131 = vadd.s32 %v114, %v116
      %v132 = vadd.s32 %v115, %v116
      %v133 = vld [vmem:[%s1] sm:$0x1]
      %v134 = vlaneseq
      %v135 = vshrl.u32 %v134, 7
      %v136 = vsub.s32 0, %v135
      %v137 = vrot.slane %v133, %v136
      %vm138 = vcmp.eq.s32.totalorder %v117, %v137
      %vm139 = vcmp.eq.s32.totalorder %v118, %v137
      %vm140 = vcmp.eq.s32.totalorder %v119, %v137
      %vm141 = vcmp.eq.s32.totalorder %v120, %v137
      %vm142 = vcmp.eq.s32.totalorder %v121, %v137
      %vm143 = vcmp.eq.s32.totalorder %v122, %v137
      %vm144 = vcmp.eq.s32.totalorder %v123, %v137
      %vm145 = vcmp.eq.s32.totalorder %v124, %v137
      %vm146 = vcmp.eq.s32.totalorder %v125, %v137
      %vm147 = vcmp.eq.s32.totalorder %v126, %v137
      %vm148 = vcmp.eq.s32.totalorder %v127, %v137
      %vm149 = vcmp.eq.s32.totalorder %v128, %v137
      %vm150 = vcmp.eq.s32.totalorder %v129, %v137
      %vm151 = vcmp.eq.s32.totalorder %v130, %v137
      %vm152 = vcmp.eq.s32.totalorder %v131, %v137
      %vm153 = vcmp.eq.s32.totalorder %v132, %v137
      %v154 = vsel %vm138, 1, 0
      %v155 = vsel %vm139, 1, 0
      %v156 = vsel %vm140, 1, 0
      %v157 = vsel %vm141, 1, 0
      %v158 = vsel %vm142, 1, 0
      %v159 = vsel %vm143, 1, 0
      %v160 = vsel %vm144, 1, 0
      %v161 = vsel %vm145, 1, 0
      %v162 = vsel %vm146, 1, 0
      %v163 = vsel %vm147, 1, 0
      %v164 = vsel %vm148, 1, 0
      %v165 = vsel %vm149, 1, 0
      %v166 = vsel %vm150, 1, 0
      %v167 = vsel %vm151, 1, 0
      %v168 = vsel %vm152, 1, 0
      %v169 = vsel %vm153, 1, 0
      %v170 = vcvt.s32.f32 %v154
      %v171 = vcvt.s32.f32 %v155
      %v172 = vcvt.s32.f32 %v156
      %v173 = vcvt.s32.f32 %v157
      %v174 = vcvt.s32.f32 %v158
      %v175 = vcvt.s32.f32 %v159
      %v176 = vcvt.s32.f32 %v160
      %v177 = vcvt.s32.f32 %v161
      %v178 = vcvt.s32.f32 %v162
      %v179 = vcvt.s32.f32 %v163
      %v180 = vcvt.s32.f32 %v164
      %v181 = vcvt.s32.f32 %v165
      %v182 = vcvt.s32.f32 %v166
      %v183 = vcvt.s32.f32 %v167
      %v184 = vcvt.s32.f32 %v168
      %v185 = vcvt.s32.f32 %v169
      %v186 = vld [vmem:[#allocation2] sm:$0xff]
      %v187 = vld [vmem:[#allocation2 + $0x8] sm:$0xff]
      %v188 = vld [vmem:[#allocation2 + $0x10] sm:$0xff]
      %v189 = vld [vmem:[#allocation2 + $0x18] sm:$0xff]
      %v190 = vld [vmem:[#allocation2 + $0x20] sm:$0xff]
      %v191 = vld [vmem:[#allocation2 + $0x28] sm:$0xff]
      %v192 = vld [vmem:[#allocation2 + $0x30] sm:$0xff]
      %v193 = vld [vmem:[#allocation2 + $0x38] sm:$0xff]
      %v194 = vld [vmem:[#allocation2 + $0x40] sm:$0xff]
      %v195 = vld [vmem:[#allocation2 + $0x48] sm:$0xff]
      %v196 = vld [vmem:[#allocation2 + $0x50] sm:$0xff]
      %v197 = vld [vmem:[#allocation2 + $0x58] sm:$0xff]
      %v198 = vld [vmem:[#allocation2 + $0x60] sm:$0xff]
      %v199 = vld [vmem:[#allocation2 + $0x68] sm:$0xff]
      %v200 = vld [vmem:[#allocation2 + $0x70] sm:$0xff]
      %v201 = vld [vmem:[#allocation2 + $0x78] sm:$0xff]
      %v202 = vld [vmem:[%s65] sm:$0xff]
      %v203 = vld [vmem:[%s65 + $0x8] sm:$0xff]
      %v204 = vld [vmem:[%s65 + $0x10] sm:$0xff]
      %v205 = vld [vmem:[%s65 + $0x18] sm:$0xff]
      %v206 = vld [vmem:[%s65 + $0x20] sm:$0xff]
      %v207 = vld [vmem:[%s65 + $0x28] sm:$0xff]
      %v208 = vld [vmem:[%s65 + $0x30] sm:$0xff]
      %v209 = vld [vmem:[%s65 + $0x38] sm:$0xff]
      %v210 = vld [vmem:[%s65 + $0x40] sm:$0xff]
      %v211 = vld [vmem:[%s65 + $0x48] sm:$0xff]
      %v212 = vld [vmem:[%s65 + $0x50] sm:$0xff]
      %v213 = vld [vmem:[%s65 + $0x58] sm:$0xff]
      %v214 = vld [vmem:[%s65 + $0x60] sm:$0xff]
      %v215 = vld [vmem:[%s65 + $0x68] sm:$0xff]
      %v216 = vld [vmem:[%s65 + $0x70] sm:$0xff]
      %v217 = vld [vmem:[%s65 + $0x78] sm:$0xff]
      %218 = vmatprep.subr.mxu0 0.0
      %219 = vmatpush1.msra.mxu0 %v217
      %220 = vmatprep.subr.mxu0 0.0
      %221 = vmatpush1.msra.mxu0 %v216
      %222 = vmatprep.subr.mxu0 0.0
      %223 = vmatpush1.msra.mxu0 %v215
      %224 = vmatprep.subr.mxu0 0.0
      %225 = vmatpush1.msra.mxu0 %v214
      %226 = vmatprep.subr.mxu0 0.0
      %227 = vmatpush1.msra.mxu0 %v213
      %228 = vmatprep.subr.mxu0 0.0
      %229 = vmatpush1.msra.mxu0 %v212
      %230 = vmatprep.subr.mxu0 0.0
      %231 = vmatpush1.msra.mxu0 %v211
      %232 = vmatprep.subr.mxu0 0.0
      %233 = vmatpush1.msra.mxu0 %v210
      %234 = vmatprep.subr.mxu0 0.0
      %235 = vmatpush1.msra.mxu0 %v209
      %236 = vmatprep.subr.mxu0 0.0
      %237 = vmatpush1.msra.mxu0 %v208
      %238 = vmatprep.subr.mxu0 0.0
      %239 = vmatpush1.msra.mxu0 %v207
      %240 = vmatprep.subr.mxu0 0.0
      %241 = vmatpush1.msra.mxu0 %v206
      %242 = vmatprep.subr.mxu0 0.0
      %243 = vmatpush1.msra.mxu0 %v205
      %244 = vmatprep.subr.mxu0 0.0
      %245 = vmatpush1.msra.mxu0 %v204
      %246 = vmatprep.subr.mxu0 0.0
      %247 = vmatpush1.msra.mxu0 %v203
      %248 = vmatprep.subr.mxu0 0.0
      %249 = vmatpush1.msra.mxu0 %v202
      %250 = vmatprep.subr.mxu0 0.0
      %251 = vmatpush2.msra.mxu0 0.0
      %252 = vmatprep.subr.mxu0 0.0
      %253 = vmatpush2.msra.mxu0 0.0
      %254 = vmatprep.subr.mxu0 0.0
      %255 = vmatpush2.msra.mxu0 0.0
      %256 = vmatprep.subr.mxu0 0.0
      %257 = vmatpush2.msra.mxu0 0.0
      %258 = vmatprep.subr.mxu0 0.0
      %259 = vmatpush2.msra.mxu0 0.0
      %260 = vmatprep.subr.mxu0 0.0
      %261 = vmatpush2.msra.mxu0 0.0
      %262 = vmatprep.subr.mxu0 0.0
      %263 = vmatpush2.msra.mxu0 0.0
      %264 = vmatprep.subr.mxu0 0.0
      %265 = vmatpush2.msra.mxu0 0.0
      %266 = vmatprep.subr.mxu0 0.0
      %267 = vmatpush2.msra.mxu0 0.0
      %268 = vmatprep.subr.mxu0 0.0
      %269 = vmatpush2.msra.mxu0 0.0
      %270 = vmatprep.subr.mxu0 0.0
      %271 = vmatpush2.msra.mxu0 0.0
      %272 = vmatprep.subr.mxu0 0.0
      %273 = vmatpush2.msra.mxu0 0.0
      %274 = vmatprep.subr.mxu0 0.0
      %275 = vmatpush2.msra.mxu0 0.0
      %276 = vmatprep.subr.mxu0 0.0
      %277 = vmatpush2.msra.mxu0 0.0
      %278 = vmatprep.subr.mxu0 0.0
      %279 = vmatpush2.msra.mxu0 0.0
      %280 = vmatprep.subr.mxu0 0.0
      %281 = vmatpush2.msra.mxu0 0.0
      %282 = vmatprep.mubr.f32.mxu0 0.0
      %283 = vmatmul.mubr.f32.gmra.mxu0 %v170
      %v284 = vpop.f32.mrf.mxu0
      %v285 = vadd.f32 0.0, %v284
      %v286 = vpop.f32.mrf.mxu0
      %287 = vmatprep.mubr.f32.mxu0 0.0
      %288 = vmatmul.mubr.f32.gmra.mxu0 %v171
      %v289 = vpop.f32.mrf.mxu0
      %v290 = vadd.f32 0.0, %v289
      %v291 = vpop.f32.mrf.mxu0
      %292 = vmatprep.mubr.f32.mxu0 0.0
      %293 = vmatmul.mubr.f32.gmra.mxu0 %v172
      %v294 = vpop.f32.mrf.mxu0
      %v295 = vadd.f32 0.0, %v294
      %v296 = vpop.f32.mrf.mxu0
      %297 = vmatprep.mubr.f32.mxu0 0.0
      %298 = vmatmul.mubr.f32.gmra.mxu0 %v173
      %v299 = vpop.f32.mrf.mxu0
      %v300 = vadd.f32 0.0, %v299
      %v301 = vpop.f32.mrf.mxu0
      %302 = vmatprep.mubr.f32.mxu0 0.0
      %303 = vmatmul.mubr.f32.gmra.mxu0 %v174
      %v304 = vpop.f32.mrf.mxu0
      %v305 = vadd.f32 0.0, %v304
      %v306 = vpop.f32.mrf.mxu0
      %307 = vmatprep.mubr.f32.mxu0 0.0
      %308 = vmatmul.mubr.f32.gmra.mxu0 %v175
      %v309 = vpop.f32.mrf.mxu0
      %v310 = vadd.f32 0.0, %v309
      %v311 = vpop.f32.mrf.mxu0
      %312 = vmatprep.mubr.f32.mxu0 0.0
      %313 = vmatmul.mubr.f32.gmra.mxu0 %v176
      %v314 = vpop.f32.mrf.mxu0
      %v315 = vadd.f32 0.0, %v314
      %v316 = vpop.f32.mrf.mxu0
      %317 = vmatprep.mubr.f32.mxu0 0.0
      %318 = vmatmul.mubr.f32.gmra.mxu0 %v177
      %v319 = vpop.f32.mrf.mxu0
      %v320 = vadd.f32 0.0, %v319
      %v321 = vpop.f32.mrf.mxu0
      %322 = vmatprep.mubr.f32.mxu0 0.0
      %323 = vmatmul.mubr.f32.gmra.mxu0 %v178
      %v324 = vpop.f32.mrf.mxu0
      %v325 = vadd.f32 0.0, %v324
      %v326 = vpop.f32.mrf.mxu0
      %327 = vmatprep.mubr.f32.mxu0 0.0
      %328 = vmatmul.mubr.f32.gmra.mxu0 %v179
      %v329 = vpop.f32.mrf.mxu0
      %v330 = vadd.f32 0.0, %v329
      %v331 = vpop.f32.mrf.mxu0
      %332 = vmatprep.mubr.f32.mxu0 0.0
      %333 = vmatmul.mubr.f32.gmra.mxu0 %v180
      %v334 = vpop.f32.mrf.mxu0
      %v335 = vadd.f32 0.0, %v334
      %v336 = vpop.f32.mrf.mxu0
      %337 = vmatprep.mubr.f32.mxu0 0.0
      %338 = vmatmul.mubr.f32.gmra.mxu0 %v181
      %v339 = vpop.f32.mrf.mxu0
      %v340 = vadd.f32 0.0, %v339
      %v341 = vpop.f32.mrf.mxu0
      %342 = vmatprep.mubr.f32.mxu0 0.0
      %343 = vmatmul.mubr.f32.gmra.mxu0 %v182
      %v344 = vpop.f32.mrf.mxu0
      %v345 = vadd.f32 0.0, %v344
      %v346 = vpop.f32.mrf.mxu0
      %347 = vmatprep.mubr.f32.mxu0 0.0
      %348 = vmatmul.mubr.f32.gmra.mxu0 %v183
      %v349 = vpop.f32.mrf.mxu0
      %v350 = vadd.f32 0.0, %v349
      %v351 = vpop.f32.mrf.mxu0
      %352 = vmatprep.mubr.f32.mxu0 0.0
      %353 = vmatmul.mubr.f32.gmra.mxu0 %v184
      %v354 = vpop.f32.mrf.mxu0
      %v355 = vadd.f32 0.0, %v354
      %v356 = vpop.f32.mrf.mxu0
      %357 = vmatprep.mubr.f32.mxu0 0.0
      %358 = vmatmul.mubr.f32.gmra.mxu0 %v185
      %v359 = vpop.f32.mrf.mxu0
      %v360 = vadd.f32 0.0, %v359
      %v361 = vpop.f32.mrf.mxu0
      %362 = vdwg.mxu0
      %v363 = vadd.f32 %v186, %v285
      %v364 = vadd.f32 %v187, %v290
      %v365 = vadd.f32 %v188, %v295
      %v366 = vadd.f32 %v189, %v300
      %v367 = vadd.f32 %v190, %v305
      %v368 = vadd.f32 %v191, %v310
      %v369 = vadd.f32 %v192, %v315
      %v370 = vadd.f32 %v193, %v320
      %v371 = vadd.f32 %v194, %v325
      %v372 = vadd.f32 %v195, %v330
      %v373 = vadd.f32 %v196, %v335
      %v374 = vadd.f32 %v197, %v340
      %v375 = vadd.f32 %v198, %v345
      %v376 = vadd.f32 %v199, %v350
      %v377 = vadd.f32 %v200, %v355
      %v378 = vadd.f32 %v201, %v360
      %379 = vst [vmem:[#allocation2] sm:$0xff] %v363
      %380 = vst [vmem:[#allocation2 + $0x8] sm:$0xff] %v364
      %381 = vst [vmem:[#allocation2 + $0x10] sm:$0xff] %v365
      %382 = vst [vmem:[#allocation2 + $0x18] sm:$0xff] %v366
      %383 = vst [vmem:[#allocation2 + $0x20] sm:$0xff] %v367
      %384 = vst [vmem:[#allocation2 + $0x28] sm:$0xff] %v368
      %385 = vst [vmem:[#allocation2 + $0x30] sm:$0xff] %v369
      %386 = vst [vmem:[#allocation2 + $0x38] sm:$0xff] %v370
      %387 = vst [vmem:[#allocation2 + $0x40] sm:$0xff] %v371
      %388 = vst [vmem:[#allocation2 + $0x48] sm:$0xff] %v372
      %389 = vst [vmem:[#allocation2 + $0x50] sm:$0xff] %v373
      %390 = vst [vmem:[#allocation2 + $0x58] sm:$0xff] %v374
      %391 = vst [vmem:[#allocation2 + $0x60] sm:$0xff] %v375
      %392 = vst [vmem:[#allocation2 + $0x68] sm:$0xff] %v376
      %393 = vst [vmem:[#allocation2 + $0x70] sm:$0xff] %v377
      %394 = vst [vmem:[#allocation2 + $0x78] sm:$0xff] %v378
    $region21: #{tpu_custom_call.1} parent=1 // pred_fallthru
      _
    // Predicated region
    $region22: #{tpu_custom_call.1} parent=1 // pred_check
      %p395 = pneg %p74
    $region23: #{tpu_custom_call.1} parent=1 // pred_check_branch
      %397 = sbr.rel (%p395) target = $region25
    $region24: #{tpu_custom_call.1} parent=1 // pred_region
      %v398 = vld [vmem:[#allocation2] sm:$0xff]
      %v399 = vld [vmem:[#allocation2 + $0x8] sm:$0xff]
      %v400 = vld [vmem:[#allocation2 + $0x10] sm:$0xff]
      %v401 = vld [vmem:[#allocation2 + $0x18] sm:$0xff]
      %v402 = vld [vmem:[#allocation2 + $0x20] sm:$0xff]
      %v403 = vld [vmem:[#allocation2 + $0x28] sm:$0xff]
      %v404 = vld [vmem:[#allocation2 + $0x30] sm:$0xff]
      %v405 = vld [vmem:[#allocation2 + $0x38] sm:$0xff]
      %v406 = vld [vmem:[#allocation2 + $0x40] sm:$0xff]
      %v407 = vld [vmem:[#allocation2 + $0x48] sm:$0xff]
      %v408 = vld [vmem:[#allocation2 + $0x50] sm:$0xff]
      %v409 = vld [vmem:[#allocation2 + $0x58] sm:$0xff]
      %v410 = vld [vmem:[#allocation2 + $0x60] sm:$0xff]
      %v411 = vld [vmem:[#allocation2 + $0x68] sm:$0xff]
      %v412 = vld [vmem:[#allocation2 + $0x70] sm:$0xff]
      %v413 = vld [vmem:[#allocation2 + $0x78] sm:$0xff]
      %v414 = vld [vmem:[%s2] sm:$0xff]
      %v415 = vld [vmem:[%s2 + $0x8] sm:$0xff]
      %v416 = vld [vmem:[%s2 + $0x10] sm:$0xff]
      %v417 = vld [vmem:[%s2 + $0x18] sm:$0xff]
      %v418 = vld [vmem:[%s2 + $0x20] sm:$0xff]
      %v419 = vld [vmem:[%s2 + $0x28] sm:$0xff]
      %v420 = vld [vmem:[%s2 + $0x30] sm:$0xff]
      %v421 = vld [vmem:[%s2 + $0x38] sm:$0xff]
      %v422 = vld [vmem:[%s2 + $0x40] sm:$0xff]
      %v423 = vld [vmem:[%s2 + $0x48] sm:$0xff]
      %v424 = vld [vmem:[%s2 + $0x50] sm:$0xff]
      %v425 = vld [vmem:[%s2 + $0x58] sm:$0xff]
      %v426 = vld [vmem:[%s2 + $0x60] sm:$0xff]
      %v427 = vld [vmem:[%s2 + $0x68] sm:$0xff]
      %v428 = vld [vmem:[%s2 + $0x70] sm:$0xff]
      %v429 = vld [vmem:[%s2 + $0x78] sm:$0xff]
      %431 = vset.pattern.permute.xlu0 0
      %432 = vperm.xlu0 %431, %v414
      %v433 = vpop.permute.xlu0 %432
      %436 = vset.pattern.permute.xlu0 0
      %437 = vperm.xlu0 %436, %v415
      %v438 = vpop.permute.xlu0 %437
      %441 = vset.pattern.permute.xlu0 0
      %442 = vperm.xlu0 %441, %v416
      %v443 = vpop.permute.xlu0 %442
      %446 = vset.pattern.permute.xlu0 0
      %447 = vperm.xlu0 %446, %v417
      %v448 = vpop.permute.xlu0 %447
      %451 = vset.pattern.permute.xlu0 0
      %452 = vperm.xlu0 %451, %v418
      %v453 = vpop.permute.xlu0 %452
      %456 = vset.pattern.permute.xlu0 0
      %457 = vperm.xlu0 %456, %v419
      %v458 = vpop.permute.xlu0 %457
      %461 = vset.pattern.permute.xlu0 0
      %462 = vperm.xlu0 %461, %v420
      %v463 = vpop.permute.xlu0 %462
      %466 = vset.pattern.permute.xlu0 0
      %467 = vperm.xlu0 %466, %v421
      %v468 = vpop.permute.xlu0 %467
      %471 = vset.pattern.permute.xlu0 0
      %472 = vperm.xlu0 %471, %v422
      %v473 = vpop.permute.xlu0 %472
      %476 = vset.pattern.permute.xlu0 0
      %477 = vperm.xlu0 %476, %v423
      %v478 = vpop.permute.xlu0 %477
      %481 = vset.pattern.permute.xlu0 0
      %482 = vperm.xlu0 %481, %v424
      %v483 = vpop.permute.xlu0 %482
      %486 = vset.pattern.permute.xlu0 0
      %487 = vperm.xlu0 %486, %v425
      %v488 = vpop.permute.xlu0 %487
      %491 = vset.pattern.permute.xlu0 0
      %492 = vperm.xlu0 %491, %v426
      %v493 = vpop.permute.xlu0 %492
      %496 = vset.pattern.permute.xlu0 0
      %497 = vperm.xlu0 %496, %v427
      %v498 = vpop.permute.xlu0 %497
      %501 = vset.pattern.permute.xlu0 0
      %502 = vperm.xlu0 %501, %v428
      %v503 = vpop.permute.xlu0 %502
      %506 = vset.pattern.permute.xlu0 0
      %507 = vperm.xlu0 %506, %v429
      %v508 = vpop.permute.xlu0 %507
      %v510 = vmul.f32 %v398, %v433
      %v511 = vmul.f32 %v399, %v438
      %v512 = vmul.f32 %v400, %v443
      %v513 = vmul.f32 %v401, %v448
      %v514 = vmul.f32 %v402, %v453
      %v515 = vmul.f32 %v403, %v458
      %v516 = vmul.f32 %v404, %v463
      %v517 = vmul.f32 %v405, %v468
      %v518 = vmul.f32 %v406, %v473
      %v519 = vmul.f32 %v407, %v478
      %v520 = vmul.f32 %v408, %v483
      %v521 = vmul.f32 %v409, %v488
      %v522 = vmul.f32 %v410, %v493
      %v523 = vmul.f32 %v411, %v498
      %v524 = vmul.f32 %v412, %v503
      %v525 = vmul.f32 %v413, %v508
      %526 = vst [vmem:[#allocation5] sm:$0xff] %v510
      %527 = vst [vmem:[#allocation5 + $0x8] sm:$0xff] %v511
      %528 = vst [vmem:[#allocation5 + $0x10] sm:$0xff] %v512
      %529 = vst [vmem:[#allocation5 + $0x18] sm:$0xff] %v513
      %530 = vst [vmem:[#allocation5 + $0x20] sm:$0xff] %v514
      %531 = vst [vmem:[#allocation5 + $0x28] sm:$0xff] %v515
      %532 = vst [vmem:[#allocation5 + $0x30] sm:$0xff] %v516
      %533 = vst [vmem:[#allocation5 + $0x38] sm:$0xff] %v517
      %534 = vst [vmem:[#allocation5 + $0x40] sm:$0xff] %v518
      %535 = vst [vmem:[#allocation5 + $0x48] sm:$0xff] %v519
      %536 = vst [vmem:[#allocation5 + $0x50] sm:$0xff] %v520
      %537 = vst [vmem:[#allocation5 + $0x58] sm:$0xff] %v521
      %538 = vst [vmem:[#allocation5 + $0x60] sm:$0xff] %v522
      %539 = vst [vmem:[#allocation5 + $0x68] sm:$0xff] %v523
      %540 = vst [vmem:[#allocation5 + $0x70] sm:$0xff] %v524
      %541 = vst [vmem:[#allocation5 + $0x78] sm:$0xff] %v525
    $region25: #{tpu_custom_call.1} parent=1 // pred_fallthru
      _
    // Predicated region
    $region26: #{tpu_custom_call.1} parent=1 // pred_check
      _
    $region27: #{tpu_custom_call.1} parent=1 // pred_check_branch
      %543 = sbr.rel (0) target = $region29
    $region28: #{tpu_custom_call.1} parent=1 // pred_region
      %s545 = ssub.s32 2048, 2048
      %546 = vsyncadd [#allocation6], %s545
      %s547 = sshll.u32 [#allocation5], 4
      %s548 = int_to_ptr.vmem [resolvable:$true] %s547
      %553 = dma.vmem_to_hbm [thread:$0]  %s548, 2048, %s4, [#allocation6], 128, 128, 8
    $region29: #{tpu_custom_call.1} parent=1 // pred_fallthru
      _
    // Predicated region
    $region30: #{tpu_custom_call.1} parent=1 // pred_check
      _
    $region31: #{tpu_custom_call.1} parent=1 // pred_check_branch
      %555 = sbr.rel (0) target = $region33
    $region32: #{tpu_custom_call.1} parent=1 // pred_region
      %556 = dma.done [#allocation6], 2048
    $region33: #{tpu_custom_call.1} parent=1 // pred_fallthru
      _
    %557 = vsyncpa [#allocation6], 1

</llo_original>
